<compile_context>
chip_gen: v7x
topology: tpu7x:2x2x1
jax: 0.10.0
libtpu: 0.0.40
codegen_flags: <defaults>
</compile_context>

<pallas_src>
import jax
import jax.numpy as jnp
from jax.experimental import pallas as pl
from jax.experimental.pallas import tpu as pltpu


def _round_up(n, m):
    return ((n + m - 1) // m) * m


def _vmem_capacity_bytes():
    """Physical per-core VMEM; conservative (v7x-sized) fallback if the query fails."""
    try:
        cap = getattr(pltpu.get_tpu_info(), "vmem_capacity_bytes", None)
        if cap:
            return int(cap)
    except Exception:
        pass
    return 64 * 1024 * 1024


def _vime_kernel(x_ref, wh_ref, bh_ref, wmf_ref, bmf_ref, out_ref, h_ref):
    # grid = (batch tiles, N tiles of the fused mask|feature head)
    # x_ref:   [TB, Dp]   bf16 batch tile
    # wh_ref:  [Dp, Dp]   bf16 hidden weights (single-buffered, VMEM resident)
    # bh_ref:  [1, Dp]    f32
    # wmf_ref: [Dp, TN]   bf16 fused mask|feature weight tile
    # bmf_ref: [1, TN]    f32
    # out_ref: [TB, TN]   sigmoid outputs (mask | feature)
    # h_ref:   [TB, Dp]   bf16 scratch: relu hidden, reused across N tiles

    # h = relu(x @ Wh + bh), computed once per batch tile (inner N axis == 0).
    @pl.when(pl.program_id(1) == 0)
    def _():
        h = jnp.dot(x_ref[...], wh_ref[...], preferred_element_type=jnp.float32)
        h = jnp.maximum(h + bh_ref[...], 0.0)
        h_ref[...] = h.astype(h_ref.dtype)

    # [mask | feature] tile = sigmoid(h @ Wmf + bmf)
    z = jnp.dot(h_ref[...], wmf_ref[...], preferred_element_type=jnp.float32)
    z = z + bmf_ref[...]
    # sigmoid = 1/(1+exp(-z)): exp on the EUP, approx reciprocal keeps the divide
    # off the VALU (v5e micro-opt, harmless elsewhere).
    out_ref[...] = pl.reciprocal(1.0 + jnp.exp(-z), approx=True).astype(out_ref.dtype)


def prepare_params(params):
    """One-time weight prep: pad to lane multiples, cast to bf16, fuse the two heads.

    params: Wh, Wm, Wf of shape [D, D] stored so the kernel computes x @ W (i.e. the
            transpose of PyTorch Linear's [out, in] weight) and biases bh, bm, bf of
            shape [1, D].
    """
    D = params["Wh"].shape[0]
    Dp = max(128, _round_up(D, 128))
    cd = jnp.bfloat16

    def pad_w(w):
        if D == Dp:
            return w.astype(cd)
        return jnp.zeros((Dp, Dp), cd).at[:D, :D].set(w.astype(cd))

    def pad_b(b):
        b = jnp.asarray(b, jnp.float32).reshape(1, D)
        if D == Dp:
            return b
        return jnp.zeros((1, Dp), jnp.float32).at[:, :D].set(b)

    wh = pad_w(params["Wh"])
    wmf = jnp.concatenate([pad_w(params["Wm"]), pad_w(params["Wf"])], axis=1)
    bh = pad_b(params["bh"])
    bmf = jnp.concatenate([pad_b(params["bm"]), pad_b(params["bf"])], axis=1)
    return {"D": D, "Dp": Dp, "wh": wh, "bh": bh, "wmf": wmf, "bmf": bmf}


def vime_self_supervised(x, params, *, block_b=512, out_dtype=jnp.float32):
    """Forward pass of VIMESelfSupervised. Returns (mask, feature), each [B, D] f32."""
    if "wmf" not in params:            # accept raw (unprepared) params for convenience
        params = prepare_params(params)
    D, Dp = params["D"], params["Dp"]
    wh, bh, wmf, bmf = params["wh"], params["bh"], params["wmf"], params["bmf"]

    B = x.shape[0]
    assert x.shape[1] == D
    cd = wh.dtype
    out_bytes = jnp.dtype(out_dtype).itemsize

    cap = int(_vmem_capacity_bytes() * 0.84)   # ~54 MiB v7x, ~107 MiB v5e/v6e

    # ---- batch tile: big enough to amortize per-step overhead, but keep >= 2 grid
    # steps so a v7x megacore can shard the "parallel" batch axis across its 2 TCs.
    Bp8 = _round_up(max(B, 8), 8)
    tb = min(_round_up(block_b, 8), Bp8)
    if Bp8 <= tb and Bp8 >= 16:
        tb = _round_up((Bp8 + 1) // 2, 8)

    # ---- N tile of the fused head: widest multiple of 128 dividing 2*Dp that keeps
    # single-buffered weights + double-buffered x/out tiles + h scratch within budget.
    def vmem_need(tb_, tn_, wmf_bufs):
        return (2 * tb_ * Dp * 2                        # x tiles (bf16, dbl-buffered)
                + 2 * tb_ * tn_ * out_bytes             # out tiles (dbl-buffered)
                + Dp * Dp * 2 + Dp * 4                  # Wh + bh (single-buffered)
                + wmf_bufs * (Dp * tn_ * 2 + tn_ * 4)   # Wmf/bmf tile(s)
                + tb_ * Dp * 2                          # h scratch (bf16)
                + (2 << 20))                            # margin

    n_lanes = (2 * Dp) // 128
    tn = None
    for k in range(n_lanes, 0, -1):
        if n_lanes % k:
            continue
        cand = k * 128
        if vmem_need(tb, cand, 1 if cand == 2 * Dp else 2) <= cap:
            tn = cand
            break
    if tn is None:
        tn = 128
        while tb > 8 and vmem_need(tb, tn, 2) > cap:
            tb = max(8, _round_up(tb // 2, 8))
    # TODO(synk): K-tile Wh (f32 VMEM accumulator + pl.when init/finalize) for Dp so
    # large that a resident [Dp, Dp] bf16 Wh alone exceeds the VMEM budget.

    Bp = _round_up(Bp8, tb)
    n_b, n_n = Bp // tb, (2 * Dp) // tn

    # ---- activations: cast only (no standalone pad pass) when shapes already line up.
    if (B, D) == (Bp, Dp):
        xp = x.astype(cd)
    else:
        xp = jnp.zeros((Bp, Dp), cd).at[:B, :D].set(x.astype(cd))

    cost = pl.CostEstimate(
        flops=6 * Bp * Dp * Dp,
        transcendentals=2 * Bp * 2 * Dp,
        bytes_accessed=(xp.size * 2 + wh.size * 2 + wmf.size * 2
                        + bh.size * 4 + bmf.size * 4 + Bp * 2 * Dp * out_bytes),
    )

    def call(single_buffer_weights):
        resident = ({"pipeline_mode": pl.Buffered(1)} if single_buffer_weights else {})
        head = resident if n_n == 1 else {}        # Wmf fully resident only if one N tile
        wmf_bufs = 1 if (single_buffer_weights and n_n == 1) else 2
        need = vmem_need(tb, tn, wmf_bufs)
        if not single_buffer_weights:
            need += Dp * Dp * 2 + Dp * 4           # Wh/bh double-buffered in fallback
        vlim = int(min(cap, max(need + (2 << 20), 16 << 20)))
        return pl.pallas_call(
            _vime_kernel,
            out_shape=jax.ShapeDtypeStruct((Bp, 2 * Dp), out_dtype),
            grid=(n_b, n_n),
            in_specs=[
                pl.BlockSpec((tb, Dp), lambda i, j: (i, 0)),               # x (batch tiled)
                pl.BlockSpec((Dp, Dp), lambda i, j: (0, 0), **resident),   # Wh (resident)
                pl.BlockSpec((1, Dp), lambda i, j: (0, 0), **resident),    # bh (resident)
                pl.BlockSpec((Dp, tn), lambda i, j: (0, j), **head),       # Wmf (N tiled)
                pl.BlockSpec((1, tn), lambda i, j: (0, j), **head),        # bmf (N tiled)
            ],
            out_specs=pl.BlockSpec((tb, tn), lambda i, j: (i, j)),
            scratch_shapes=[pltpu.VMEM((tb, Dp), cd)],                     # h scratch
            compiler_params=pltpu.CompilerParams(
                dimension_semantics=("parallel", "arbitrary"),
                vmem_limit_bytes=vlim,
            ),
            cost_estimate=cost,
        )(xp, wh, bh, wmf, bmf)

    try:
        out = call(True)
    except Exception:
        # pl.Buffered(1) / pipeline_mode unsupported on this jax version: fall back to
        # default double-buffering (same semantics, larger resident VMEM).
        out = call(False)

    mask = out[:B, :D].astype(jnp.float32)
    feature = out[:B, Dp:Dp + D].astype(jnp.float32)
    return mask, feature


def init_params(input_dim, key):
    """Deterministic init mimicking PyTorch Linear default (uniform +-1/sqrt(fan_in))."""
    keys = jax.random.split(key, 6)
    bound = 1.0 / jnp.sqrt(jnp.float32(input_dim))

    def u(k, shape):
        return jax.random.uniform(k, shape, jnp.float32, -bound, bound)

    return {
        "Wh": u(keys[0], (input_dim, input_dim)),
        "bh": u(keys[1], (1, input_dim)),
        "Wm": u(keys[2], (input_dim, input_dim)),
        "bm": u(keys[3], (1, input_dim)),
        "Wf": u(keys[4], (input_dim, input_dim)),
        "bf": u(keys[5], (1, input_dim)),
    }


def _reference(x, p):
    # Matches the kernel's precision path: bf16 MXU operands, f32 accumulate/elementwise.
    cd = jnp.bfloat16
    h = jnp.dot(x.astype(cd), p["Wh"].astype(cd),
                preferred_element_type=jnp.float32) + p["bh"]
    h = jnp.maximum(h, 0.0)
    m = jnp.dot(h.astype(cd), p["Wm"].astype(cd),
                preferred_element_type=jnp.float32) + p["bm"]
    f = jnp.dot(h.astype(cd), p["Wf"].astype(cd),
                preferred_element_type=jnp.float32) + p["bf"]
    return jax.nn.sigmoid(m), jax.nn.sigmoid(f)


if __name__ == "__main__":
    key = jax.random.PRNGKey(0)
    k_x, k_p = jax.random.split(key)

    batch, input_dim = 8, 32
    x = jax.random.normal(k_x, (batch, input_dim), dtype=jnp.float32)
    raw = init_params(input_dim, k_p)
    prepared = prepare_params(raw)        # one-time weight pad / bf16 cast / head fusion

    mask, feature = vime_self_supervised(x, prepared)
    jax.block_until_ready((mask, feature))

    ref_mask, ref_feature = _reference(x, raw)
    assert mask.shape == (batch, input_dim)
    assert feature.shape == (batch, input_dim)
    assert jnp.allclose(mask, ref_mask, atol=3e-3, rtol=3e-3)
    assert jnp.allclose(feature, ref_feature, atol=3e-3, rtol=3e-3)

    print("KERNEL_OK")
</pallas_src>

<mosaic_0001>
module attributes {stable_mosaic.version = 11 : i64} {
  func.func @_vime_kernel(%arg0: i32, %arg1: i32, %arg2: memref<8x128xbf16, #tpu.memory_space<vmem>>, %arg3: memref<128x128xbf16, #tpu.memory_space<vmem>>, %arg4: memref<1x128xf32, #tpu.memory_space<vmem>>, %arg5: memref<128x256xbf16, #tpu.memory_space<vmem>>, %arg6: memref<1x256xf32, #tpu.memory_space<vmem>>, %arg7: memref<8x256xf32, #tpu.memory_space<vmem>>, %arg8: memref<8x128xbf16, #tpu.memory_space<vmem>>) attributes {dimension_semantics = [#tpu.dimension_semantics<parallel>, #tpu.dimension_semantics<arbitrary>], iteration_bounds = array<i64: 1, 1>, scalar_prefetch = 0 : i64, scratch_operands = 1 : i64, tpu.core_type = #tpu.core_type<tc>, window_params = [{transform_indices = @transform_0, window_bounds = array<i64: 8, 128>}, {pipeline_mode = #tpu.pipeline_mode<synchronous>, transform_indices = @transform_1, window_bounds = array<i64: 128, 128>}, {pipeline_mode = #tpu.pipeline_mode<synchronous>, transform_indices = @transform_2, window_bounds = array<i64: 1, 128>}, {pipeline_mode = #tpu.pipeline_mode<synchronous>, transform_indices = @transform_3, window_bounds = array<i64: 128, 256>}, {pipeline_mode = #tpu.pipeline_mode<synchronous>, transform_indices = @transform_4, window_bounds = array<i64: 1, 256>}, {transform_indices = @transform_5, window_bounds = array<i64: 8, 256>}]} {
    %c0_i32 = arith.constant 0 : i32
    %0 = arith.cmpi eq, %arg1, %c0_i32 : i32
    %1 = arith.extui %0 : i1 to i32
    %c0_i32_0 = arith.constant 0 : i32
    %2 = arith.cmpi ne, %1, %c0_i32_0 : i32
    scf.if %2 {
      %c0_10 = arith.constant 0 : index
      %c0_11 = arith.constant 0 : index
      %16 = vector.load %arg2[%c0_10, %c0_11] : memref<8x128xbf16, #tpu.memory_space<vmem>>, vector<8x128xbf16>
      %c0_12 = arith.constant 0 : index
      %c0_13 = arith.constant 0 : index
      %17 = vector.load %arg3[%c0_12, %c0_13] : memref<128x128xbf16, #tpu.memory_space<vmem>>, vector<128x128xbf16>
      %cst_14 = arith.constant dense<0.000000e+00> : vector<8x128xf32>
      %18 = tpu.matmul %16, %17, %cst_14 {dimension_numbers = #tpu.dot_dimension_numbers<[1], [0], [0], [1], [0, 0, 1, 1], [], []>} : vector<8x128xbf16>, vector<128x128xbf16>, vector<8x128xf32> -> vector<8x128xf32>
      %c0_15 = arith.constant 0 : index
      %c0_16 = arith.constant 0 : index
      %19 = vector.load %arg4[%c0_15, %c0_16] : memref<1x128xf32, #tpu.memory_space<vmem>>, vector<1x128xf32>
      %20 = vector.broadcast %19 : vector<1x128xf32> to vector<8x128xf32>
      %21 = arith.addf %18, %20 : vector<8x128xf32>
      %cst_17 = arith.constant 0.000000e+00 : f32
      %22 = vector.broadcast %cst_17 : f32 to vector<8x128xf32>
      %23 = arith.maximumf %21, %22 : vector<8x128xf32>
      %24 = arith.truncf %23 : vector<8x128xf32> to vector<8x128xbf16>
      %c0_18 = arith.constant 0 : index
      %c0_19 = arith.constant 0 : index
      %25 = vector.load %arg8[%c0_18, %c0_19] : memref<8x128xbf16, #tpu.memory_space<vmem>>, vector<8x128xbf16>
      tpu.vector_store %arg8[%c0_18, %c0_19], %24 {strides = array<i32>} : memref<8x128xbf16, #tpu.memory_space<vmem>>, vector<8x128xbf16>,
    } else {
    }
    %c0 = arith.constant 0 : index
    %c0_1 = arith.constant 0 : index
    %3 = vector.load %arg8[%c0, %c0_1] : memref<8x128xbf16, #tpu.memory_space<vmem>>, vector<8x128xbf16>
    %c0_2 = arith.constant 0 : index
    %c0_3 = arith.constant 0 : index
    %4 = vector.load %arg5[%c0_2, %c0_3] : memref<128x256xbf16, #tpu.memory_space<vmem>>, vector<128x256xbf16>
    %cst = arith.constant dense<0.000000e+00> : vector<8x256xf32>
    %5 = tpu.matmul %3, %4, %cst {dimension_numbers = #tpu.dot_dimension_numbers<[1], [0], [0], [1], [0, 0, 1, 1], [], []>} : vector<8x128xbf16>, vector<128x256xbf16>, vector<8x256xf32> -> vector<8x256xf32>
    %c0_4 = arith.constant 0 : index
    %c0_5 = arith.constant 0 : index
    %6 = vector.load %arg6[%c0_4, %c0_5] : memref<1x256xf32, #tpu.memory_space<vmem>>, vector<1x256xf32>
    %7 = vector.broadcast %6 : vector<1x256xf32> to vector<8x256xf32>
    %8 = arith.addf %5, %7 : vector<8x256xf32>
    %cst_6 = arith.constant 0.000000e+00 : f32
    %9 = vector.broadcast %cst_6 : f32 to vector<8x256xf32>
    %10 = arith.subf %9, %8 : vector<8x256xf32>
    %11 = math.exp %10 : vector<8x256xf32>
    %cst_7 = arith.constant 1.000000e+00 : f32
    %12 = vector.broadcast %cst_7 : f32 to vector<8x256xf32>
    %13 = arith.addf %12, %11 : vector<8x256xf32>
    %14 = tpu.reciprocal %13 {approx = true} : vector<8x256xf32> -> vector<8x256xf32>
    %c0_8 = arith.constant 0 : index
    %c0_9 = arith.constant 0 : index
    %15 = vector.load %arg7[%c0_8, %c0_9] : memref<8x256xf32, #tpu.memory_space<vmem>>, vector<8x256xf32>
    tpu.vector_store %arg7[%c0_8, %c0_9], %14 {strides = array<i32>} : memref<8x256xf32, #tpu.memory_space<vmem>>, vector<8x256xf32>,
    return
  }
  func.func @transform_0(%arg0: i32, %arg1: i32) -> (i32, i32) {
    %c0_i32 = arith.constant 0 : i32
    %c0_i32_0 = arith.constant 0 : i32
    return %arg0, %c0_i32 : i32, i32
  }
  func.func @transform_1(%arg0: i32, %arg1: i32) -> (i32, i32) {
    %c0_i32 = arith.constant 0 : i32
    %c0_i32_0 = arith.constant 0 : i32
    %c0_i32_1 = arith.constant 0 : i32
    return %c0_i32, %c0_i32_0 : i32, i32
  }
  func.func @transform_2(%arg0: i32, %arg1: i32) -> (i32, i32) {
    %c0_i32 = arith.constant 0 : i32
    %c0_i32_0 = arith.constant 0 : i32
    %c0_i32_1 = arith.constant 0 : i32
    return %c0_i32, %c0_i32_0 : i32, i32
  }
  func.func @transform_3(%arg0: i32, %arg1: i32) -> (i32, i32) {
    %c0_i32 = arith.constant 0 : i32
    %c0_i32_0 = arith.constant 0 : i32
    return %c0_i32, %arg1 : i32, i32
  }
  func.func @transform_4(%arg0: i32, %arg1: i32) -> (i32, i32) {
    %c0_i32 = arith.constant 0 : i32
    %c0_i32_0 = arith.constant 0 : i32
    return %c0_i32, %arg1 : i32, i32
  }
  func.func @transform_5(%arg0: i32, %arg1: i32) -> (i32, i32) {
    %c0_i32 = arith.constant 0 : i32
    return %arg0, %arg1 : i32, i32
  }
}

module attributes {stable_mosaic.version = 11 : i64} {
  func.func @_vime_kernel(%arg0: i32, %arg1: i32, %arg2: memref<8x128xbf16, #tpu.memory_space<vmem>>, %arg3: memref<128x128xbf16, #tpu.memory_space<vmem>>, %arg4: memref<1x128xf32, #tpu.memory_space<vmem>>, %arg5: memref<128x256xbf16, #tpu.memory_space<vmem>>, %arg6: memref<1x256xf32, #tpu.memory_space<vmem>>, %arg7: memref<8x256xf32, #tpu.memory_space<vmem>>, %arg8: memref<8x128xbf16, #tpu.memory_space<vmem>>) attributes {dimension_semantics = [#tpu.dimension_semantics<parallel>, #tpu.dimension_semantics<arbitrary>], iteration_bounds = array<i64: 1, 1>, scalar_prefetch = 0 : i64, scratch_operands = 1 : i64, tpu.core_type = #tpu.core_type<tc>, window_params = [{transform_indices = @transform_0, window_bounds = array<i64: 8, 128>}, {pipeline_mode = #tpu.pipeline_mode<synchronous>, transform_indices = @transform_1, window_bounds = array<i64: 128, 128>}, {pipeline_mode = #tpu.pipeline_mode<synchronous>, transform_indices = @transform_2, window_bounds = array<i64: 1, 128>}, {transform_indices = @transform_3, window_bounds = array<i64: 128, 256>}, {transform_indices = @transform_4, window_bounds = array<i64: 1, 256>}, {transform_indices = @transform_5, window_bounds = array<i64: 8, 256>}]} {
    %c0_i32 = arith.constant 0 : i32
    %0 = arith.cmpi eq, %arg1, %c0_i32 : i32
    %1 = arith.extui %0 : i1 to i32
    %c0_i32_0 = arith.constant 0 : i32
    %2 = arith.cmpi ne, %1, %c0_i32_0 : i32
    scf.if %2 {
      %c0_10 = arith.constant 0 : index
      %c0_11 = arith.constant 0 : index
      %16 = vector.load %arg2[%c0_10, %c0_11] : memref<8x128xbf16, #tpu.memory_space<vmem>>, vector<8x128xbf16>
      %c0_12 = arith.constant 0 : index
      %c0_13 = arith.constant 0 : index
      %17 = vector.load %arg3[%c0_12, %c0_13] : memref<128x128xbf16, #tpu.memory_space<vmem>>, vector<128x128xbf16>
      %cst_14 = arith.constant dense<0.000000e+00> : vector<8x128xf32>
      %18 = tpu.matmul %16, %17, %cst_14 {dimension_numbers = #tpu.dot_dimension_numbers<[1], [0], [0], [1], [0, 0, 1, 1], [], []>} : vector<8x128xbf16>, vector<128x128xbf16>, vector<8x128xf32> -> vector<8x128xf32>
      %c0_15 = arith.constant 0 : index
      %c0_16 = arith.constant 0 : index
      %19 = vector.load %arg4[%c0_15, %c0_16] : memref<1x128xf32, #tpu.memory_space<vmem>>, vector<1x128xf32>
      %20 = vector.broadcast %19 : vector<1x128xf32> to vector<8x128xf32>
      %21 = arith.addf %18, %20 : vector<8x128xf32>
      %cst_17 = arith.constant 0.000000e+00 : f32
      %22 = vector.broadcast %cst_17 : f32 to vector<8x128xf32>
      %23 = arith.maximumf %21, %22 : vector<8x128xf32>
      %24 = arith.truncf %23 : vector<8x128xf32> to vector<8x128xbf16>
      %c0_18 = arith.constant 0 : index
      %c0_19 = arith.constant 0 : index
      %25 = vector.load %arg8[%c0_18, %c0_19] : memref<8x128xbf16, #tpu.memory_space<vmem>>, vector<8x128xbf16>
      tpu.vector_store %arg8[%c0_18, %c0_19], %24 {strides = array<i32>} : memref<8x128xbf16, #tpu.memory_space<vmem>>, vector<8x128xbf16>,
    } else {
    }
    %c0 = arith.constant 0 : index
    %c0_1 = arith.constant 0 : index
    %3 = vector.load %arg8[%c0, %c0_1] : memref<8x128xbf16, #tpu.memory_space<vmem>>, vector<8x128xbf16>
    %c0_2 = arith.constant 0 : index
    %c0_3 = arith.constant 0 : index
    %4 = vector.load %arg5[%c0_2, %c0_3] : memref<128x256xbf16, #tpu.memory_space<vmem>>, vector<128x256xbf16>
    %cst = arith.constant dense<0.000000e+00> : vector<8x256xf32>
    %5 = tpu.matmul %3, %4, %cst {dimension_numbers = #tpu.dot_dimension_numbers<[1], [0], [0], [1], [0, 0, 1, 1], [], []>} : vector<8x128xbf16>, vector<128x256xbf16>, vector<8x256xf32> -> vector<8x256xf32>
    %c0_4 = arith.constant 0 : index
    %c0_5 = arith.constant 0 : index
    %6 = vector.load %arg6[%c0_4, %c0_5] : memref<1x256xf32, #tpu.memory_space<vmem>>, vector<1x256xf32>
    %7 = vector.broadcast %6 : vector<1x256xf32> to vector<8x256xf32>
    %8 = arith.addf %5, %7 : vector<8x256xf32>
    %cst_6 = arith.constant 0.000000e+00 : f32
    %9 = vector.broadcast %cst_6 : f32 to vector<8x256xf32>
    %10 = arith.subf %9, %8 : vector<8x256xf32>
    %11 = math.exp %10 : vector<8x256xf32>
    %cst_7 = arith.constant 1.000000e+00 : f32
    %12 = vector.broadcast %cst_7 : f32 to vector<8x256xf32>
    %13 = arith.addf %12, %11 : vector<8x256xf32>
    %14 = tpu.reciprocal %13 {approx = true} : vector<8x256xf32> -> vector<8x256xf32>
    %c0_8 = arith.constant 0 : index
    %c0_9 = arith.constant 0 : index
    %15 = vector.load %arg7[%c0_8, %c0_9] : memref<8x256xf32, #tpu.memory_space<vmem>>, vector<8x256xf32>
    tpu.vector_store %arg7[%c0_8, %c0_9], %14 {strides = array<i32>} : memref<8x256xf32, #tpu.memory_space<vmem>>, vector<8x256xf32>,
    return
  }
  func.func @transform_0(%arg0: i32, %arg1: i32) -> (i32, i32) {
    %c0_i32 = arith.constant 0 : i32
    %c0_i32_0 = arith.constant 0 : i32
    return %arg0, %c0_i32 : i32, i32
  }
  func.func @transform_1(%arg0: i32, %arg1: i32) -> (i32, i32) {
    %c0_i32 = arith.constant 0 : i32
    %c0_i32_0 = arith.constant 0 : i32
    %c0_i32_1 = arith.constant 0 : i32
    return %c0_i32, %c0_i32_0 : i32, i32
  }
  func.func @transform_2(%arg0: i32, %arg1: i32) -> (i32, i32) {
    %c0_i32 = arith.constant 0 : i32
    %c0_i32_0 = arith.constant 0 : i32
    %c0_i32_1 = arith.constant 0 : i32
    return %c0_i32, %c0_i32_0 : i32, i32
  }
  func.func @transform_3(%arg0: i32, %arg1: i32) -> (i32, i32) {
    %c0_i32 = arith.constant 0 : i32
    %c0_i32_0 = arith.constant 0 : i32
    return %c0_i32, %arg1 : i32, i32
  }
  func.func @transform_4(%arg0: i32, %arg1: i32) -> (i32, i32) {
    %c0_i32 = arith.constant 0 : i32
    %c0_i32_0 = arith.constant 0 : i32
    return %c0_i32, %arg1 : i32, i32
  }
  func.func @transform_5(%arg0: i32, %arg1: i32) -> (i32, i32) {
    %c0_i32 = arith.constant 0 : i32
    return %arg0, %arg1 : i32, i32
  }
}

</mosaic_0001>

<llo_original>
// kernel: tpu_custom_call.1
$region0: #{tpu_custom_call.1}
  #allocation0 [shape = 'u32[]', space=smem, size = 0x4, offset = 0x4, fixed_abs, tag = 'smem constant byte address 0x4 - core index']
  #allocation1 [shape = 'u32[144,128]{1,0:T(1,128)}', space=vmem, size = 0x12000, scoped, tag = 'internal scratch']
  #allocation2 [shape = 'bf16[8,128]{1,0:T(8,128)(2,1)}', space=vmem, size = 0x800, scoped, tag = 'scratch operand']
  %s0 = inlined_call_operand.hbm [shape: bf16[8,128], index: 0, kind: input, shape index: {}]
  %s1 = inlined_call_operand.hbm [shape: bf16[128,128], index: 1, kind: input, shape index: {}]
  %s2 = inlined_call_operand.vmem [shape: f32[1,128], index: 2, kind: input, shape index: {}]
  %s3 = inlined_call_operand.hbm [shape: bf16[128,256], index: 3, kind: input, shape index: {}]
  %s4 = inlined_call_operand.vmem [shape: f32[1,256], index: 4, kind: input, shape index: {}]
  %s5 = inlined_call_operand.hbm [shape: f32[8,256], index: 5, kind: output, shape index: {}]
  %s6 = sld [smem:[#allocation0]]
  $region46: #{tpu_custom_call.1} parent=0
    _
  %s8 = ssub.s32 1, %s6
  %s9 = scalar_select 0, %s8, %s6
  $region1: #{tpu_custom_call.1} parent=0
    #allocation3 [shape = 'u8[2048]{0}', space=vmem, size = 0x800, scoped, tag = 'input window, operand 0, single buffered']
    #allocation4 [shape = 's32[1]{0}', space=sflag, size = 0x4, scoped, tag = 'scoped memory for tpu_custom_call.1']
    #allocation5 [shape = 's32[1]{0}', space=sflag, size = 0x4, scoped, tag = 'scoped memory for tpu_custom_call.1']
    #allocation6 [shape = 'u8[32768]{0}', space=vmem, size = 0x8000, scoped, tag = 'input window, operand 1, single buffered']
    #allocation7 [shape = 's32[1]{0}', space=sflag, size = 0x4, scoped, tag = 'scoped memory for tpu_custom_call.1']
    #allocation8 [shape = 'u8[65536]{0}', space=vmem, size = 0x10000, scoped, tag = 'input window, operand 3, single buffered']
    #allocation9 [shape = 'u8[8192]{0}', space=vmem, size = 0x2000, scoped, tag = 'output window, operand 0, single buffered']
    %10 = vsyncpa [#allocation4], 0
    %11 = vsyncpa [#allocation7], 0
    %12 = vsyncpa [#allocation5], 0
    // Predicated region
    $region2: #{tpu_custom_call.1} parent=1 // pred_check
      _
    $region3: #{tpu_custom_call.1} parent=1 // pred_check_branch
      %14 = sbr.rel (0) target = $region5
    $region4: #{tpu_custom_call.1} parent=1 // pred_region
      %s16 = ssub.s32 64, 64
      %17 = vsyncadd [#allocation4], %s16
      %s19 = sshll.u32 [#allocation3], 4
      %s20 = int_to_ptr.vmem [resolvable:$true] %s19
      %22 = dma.hbm_to_vmem [thread:$0]  %s0, 64, %s20, [#allocation4]
    $region5: #{tpu_custom_call.1} parent=1 // pred_fallthru
      _
    // Predicated region
    $region6: #{tpu_custom_call.1} parent=1 // pred_check
      _
    $region7: #{tpu_custom_call.1} parent=1 // pred_check_branch
      %24 = sbr.rel (0) target = $region9
    $region8: #{tpu_custom_call.1} parent=1 // pred_region
      %s26 = ssub.s32 1024, 1024
      %27 = vsyncadd [#allocation7], %s26
      %s28 = sshll.u32 [#allocation6], 4
      %s29 = int_to_ptr.vmem [resolvable:$true] %s28
      %34 = dma.hbm_to_vmem [thread:$0]  %s1, 1024, %s29, [#allocation7], 64, 64, 4
    $region9: #{tpu_custom_call.1} parent=1 // pred_fallthru
      _
    // Predicated region
    $region10: #{tpu_custom_call.1} parent=1 // pred_check
      _
    $region11: #{tpu_custom_call.1} parent=1 // pred_check_branch
      %36 = sbr.rel (0) target = $region13
    $region12: #{tpu_custom_call.1} parent=1 // pred_region
      _
    $region13: #{tpu_custom_call.1} parent=1 // pred_fallthru
      _
    // Predicated region
    $region14: #{tpu_custom_call.1} parent=1 // pred_check
      _
    $region15: #{tpu_custom_call.1} parent=1 // pred_check_branch
      %38 = sbr.rel (0) target = $region17
    $region16: #{tpu_custom_call.1} parent=1 // pred_region
      %s40 = ssub.s32 2048, 2048
      %41 = vsyncadd [#allocation7], %s40
      %s42 = sshll.u32 [#allocation8], 4
      %s43 = int_to_ptr.vmem [resolvable:$true] %s42
      %48 = dma.hbm_to_vmem [thread:$0]  %s3, 2048, %s43, [#allocation7], 128, 128, 8
    $region17: #{tpu_custom_call.1} parent=1 // pred_fallthru
      _
    // Predicated region
    $region18: #{tpu_custom_call.1} parent=1 // pred_check
      _
    $region19: #{tpu_custom_call.1} parent=1 // pred_check_branch
      %50 = sbr.rel (0) target = $region21
    $region20: #{tpu_custom_call.1} parent=1 // pred_region
      _
    $region21: #{tpu_custom_call.1} parent=1 // pred_fallthru
      _
    // Predicated region
    $region22: #{tpu_custom_call.1} parent=1 // pred_check
      _
    $region23: #{tpu_custom_call.1} parent=1 // pred_check_branch
      %52 = sbr.rel (0) target = $region25
    $region24: #{tpu_custom_call.1} parent=1 // pred_region
      %53 = dma.done [#allocation4], 64
    $region25: #{tpu_custom_call.1} parent=1 // pred_fallthru
      _
    // Predicated region
    $region26: #{tpu_custom_call.1} parent=1 // pred_check
      _
    $region27: #{tpu_custom_call.1} parent=1 // pred_check_branch
      %55 = sbr.rel (0) target = $region29
    $region28: #{tpu_custom_call.1} parent=1 // pred_region
      %56 = dma.done [#allocation7], 1024
    $region29: #{tpu_custom_call.1} parent=1 // pred_fallthru
      _
    // Predicated region
    $region30: #{tpu_custom_call.1} parent=1 // pred_check
      _
    $region31: #{tpu_custom_call.1} parent=1 // pred_check_branch
      %58 = sbr.rel (0) target = $region33
    $region32: #{tpu_custom_call.1} parent=1 // pred_region
      %59 = dma.done [#allocation7], 2048
    $region33: #{tpu_custom_call.1} parent=1 // pred_fallthru
      _
    %p61 = scmp.eq.s32.totalorder 0, 0
    // Predicated region
    $region34: #{tpu_custom_call.1} parent=1 // pred_check
      %p62 = pneg %p61
    $region35: #{tpu_custom_call.1} parent=1 // pred_check_branch
      %64 = sbr.rel (%p62) target = $region37
    $region36: #{tpu_custom_call.1} parent=1 // pred_region
      %v65 = vld [vmem:[#allocation3] sm:$0xf]
      %v66 = vld [vmem:[#allocation6] sm:$0xf]
      %v67 = vld [vmem:[#allocation6 + $0x4] sm:$0xf]
      %v68 = vld [vmem:[#allocation6 + $0x8] sm:$0xf]
      %v69 = vld [vmem:[#allocation6 + $0xc] sm:$0xf]
      %v70 = vld [vmem:[#allocation6 + $0x10] sm:$0xf]
      %v71 = vld [vmem:[#allocation6 + $0x14] sm:$0xf]
      %v72 = vld [vmem:[#allocation6 + $0x18] sm:$0xf]
      %v73 = vld [vmem:[#allocation6 + $0x1c] sm:$0xf]
      %v74 = vld [vmem:[#allocation6 + $0x20] sm:$0xf]
      %v75 = vld [vmem:[#allocation6 + $0x24] sm:$0xf]
      %v76 = vld [vmem:[#allocation6 + $0x28] sm:$0xf]
      %v77 = vld [vmem:[#allocation6 + $0x2c] sm:$0xf]
      %v78 = vld [vmem:[#allocation6 + $0x30] sm:$0xf]
      %v79 = vld [vmem:[#allocation6 + $0x34] sm:$0xf]
      %v80 = vld [vmem:[#allocation6 + $0x38] sm:$0xf]
      %v81 = vld [vmem:[#allocation6 + $0x3c] sm:$0xf]
      %v82 = vld [vmem:[%s2] sm:$0x1]
      %v84 = vlaneseq
      %v85 = vshrl.u32 %v84, 7
      %v86 = vsub.s32 0, %v85
      %v87 = vrot.slane %v82, %v86
      %v105 = vunpack.c.l.b16 %v66
      %v106 = vunpack.c.l.b16 %v67
      %v107 = vunpack.c.l.b16 %v68
      %v108 = vunpack.c.l.b16 %v69
      %v109 = vunpack.c.l.b16 %v70
      %v110 = vunpack.c.l.b16 %v71
      %v111 = vunpack.c.l.b16 %v72
      %v112 = vunpack.c.l.b16 %v73
      %v113 = vunpack.c.l.b16 %v74
      %v114 = vunpack.c.l.b16 %v75
      %v115 = vunpack.c.l.b16 %v76
      %v116 = vunpack.c.l.b16 %v77
      %v117 = vunpack.c.l.b16 %v78
      %v118 = vunpack.c.l.b16 %v79
      %v119 = vunpack.c.l.b16 %v80
      %v120 = vunpack.c.l.b16 %v81
      %v121 = vpack.c.b16 %v106, %v105
      %v122 = vpack.c.b16 %v108, %v107
      %v123 = vpack.c.b16 %v110, %v109
      %v124 = vpack.c.b16 %v112, %v111
      %v125 = vpack.c.b16 %v114, %v113
      %v126 = vpack.c.b16 %v116, %v115
      %v127 = vpack.c.b16 %v118, %v117
      %v128 = vpack.c.b16 %v120, %v119
      %137 = vmatprep.subr.bf16.mxu0 0
      %138 = vmatpush1.bf16.msra.mxu0 %v121
      %139 = vmatprep.subr.bf16.mxu0 0
      %140 = vmatpush1.bf16.msra.mxu0 %v122
      %141 = vmatprep.subr.bf16.mxu0 0
      %142 = vmatpush1.bf16.msra.mxu0 %v123
      %143 = vmatprep.subr.bf16.mxu0 0
      %144 = vmatpush1.bf16.msra.mxu0 %v124
      %145 = vmatprep.subr.bf16.mxu0 0
      %146 = vmatpush1.bf16.msra.mxu0 %v125
      %147 = vmatprep.subr.bf16.mxu0 0
      %148 = vmatpush1.bf16.msra.mxu0 %v126
      %149 = vmatprep.subr.bf16.mxu0 0
      %150 = vmatpush1.bf16.msra.mxu0 %v127
      %151 = vmatprep.subr.bf16.mxu0 0
      %152 = vmatpush1.bf16.msra.mxu0 %v128
      %153 = vmatprep.subr.bf16.mxu0 0
      %154 = vmatpush1.bf16.msra.mxu0 0
      %155 = vmatprep.subr.bf16.mxu0 0
      %156 = vmatpush1.bf16.msra.mxu0 0
      %157 = vmatprep.subr.bf16.mxu0 0
      %158 = vmatpush1.bf16.msra.mxu0 0
      %159 = vmatprep.subr.bf16.mxu0 0
      %160 = vmatpush1.bf16.msra.mxu0 0
      %161 = vmatprep.subr.bf16.mxu0 0
      %162 = vmatpush1.bf16.msra.mxu0 0
      %163 = vmatprep.subr.bf16.mxu0 0
      %164 = vmatpush1.bf16.msra.mxu0 0
      %165 = vmatprep.subr.bf16.mxu0 0
      %166 = vmatpush1.bf16.msra.mxu0 0
      %167 = vmatprep.subr.bf16.mxu0 0
      %168 = vmatpush1.bf16.msra.mxu0 0
      %169 = vmatprep.mubr.bf16.mxu0 0
      %170 = vmatmul.mubr.bf16.gmra.mrb[0].mxu0 %v65
      %v171 = vpop.f32.mrb[0].mxu0
      %v172 = vadd.f32 %v87, %v171
      %v173 = vpop.f32.mrb[0].mxu0
      %v174 = vpop.f32.mrb[0].mxu0
      %v175 = vpop.f32.mrb[0].mxu0
      %176 = vdwg.mxu0
      %v177 = vmax.f32 %v172, 0.0
      %v178 = vpack.c.bf16 %v177, %v177
      %179 = vst [vmem:[#allocation2] sm:$0xf] %v178
    $region37: #{tpu_custom_call.1} parent=1 // pred_fallthru
      _
    %v180 = vld [vmem:[#allocation2] sm:$0xf]
    %v181 = vld [vmem:[#allocation8] sm:$0xff]
    %v182 = vld [vmem:[#allocation8 + $0x8] sm:$0xff]
    %v183 = vld [vmem:[#allocation8 + $0x10] sm:$0xff]
    %v184 = vld [vmem:[#allocation8 + $0x18] sm:$0xff]
    %v185 = vld [vmem:[#allocation8 + $0x20] sm:$0xff]
    %v186 = vld [vmem:[#allocation8 + $0x28] sm:$0xff]
    %v187 = vld [vmem:[#allocation8 + $0x30] sm:$0xff]
    %v188 = vld [vmem:[#allocation8 + $0x38] sm:$0xff]
    %v189 = vld [vmem:[#allocation8 + $0x40] sm:$0xff]
    %v190 = vld [vmem:[#allocation8 + $0x48] sm:$0xff]
    %v191 = vld [vmem:[#allocation8 + $0x50] sm:$0xff]
    %v192 = vld [vmem:[#allocation8 + $0x58] sm:$0xff]
    %v193 = vld [vmem:[#allocation8 + $0x60] sm:$0xff]
    %v194 = vld [vmem:[#allocation8 + $0x68] sm:$0xff]
    %v195 = vld [vmem:[#allocation8 + $0x70] sm:$0xff]
    %v196 = vld [vmem:[#allocation8 + $0x78] sm:$0xff]
    %v197 = vld [vmem:[%s4] sm:$0x3]
    %v199 = vlaneseq
    %v200 = vshrl.u32 %v199, 7
    %v201 = vsub.s32 0, %v200
    %v202 = vrot.slane %v197, %v201
    %v203 = vlaneseq
    %v204 = vshrl.u32 %v203, 7
    %v205 = vsub.s32 1, %v204
    %v206 = vrot.slane %v197, %v205
    %v225 = vunpack.c.l.b16 %v181
    %v226 = vunpack.c.h.b16 %v181
    %v227 = vunpack.c.l.b16 %v182
    %v228 = vunpack.c.h.b16 %v182
    %v229 = vunpack.c.l.b16 %v183
    %v230 = vunpack.c.h.b16 %v183
    %v231 = vunpack.c.l.b16 %v184
    %v232 = vunpack.c.h.b16 %v184
    %v233 = vunpack.c.l.b16 %v185
    %v234 = vunpack.c.h.b16 %v185
    %v235 = vunpack.c.l.b16 %v186
    %v236 = vunpack.c.h.b16 %v186
    %v237 = vunpack.c.l.b16 %v187
    %v238 = vunpack.c.h.b16 %v187
    %v239 = vunpack.c.l.b16 %v188
    %v240 = vunpack.c.h.b16 %v188
    %v241 = vunpack.c.l.b16 %v189
    %v242 = vunpack.c.h.b16 %v189
    %v243 = vunpack.c.l.b16 %v190
    %v244 = vunpack.c.h.b16 %v190
    %v245 = vunpack.c.l.b16 %v191
    %v246 = vunpack.c.h.b16 %v191
    %v247 = vunpack.c.l.b16 %v192
    %v248 = vunpack.c.h.b16 %v192
    %v249 = vunpack.c.l.b16 %v193
    %v250 = vunpack.c.h.b16 %v193
    %v251 = vunpack.c.l.b16 %v194
    %v252 = vunpack.c.h.b16 %v194
    %v253 = vunpack.c.l.b16 %v195
    %v254 = vunpack.c.h.b16 %v195
    %v255 = vunpack.c.l.b16 %v196
    %v256 = vunpack.c.h.b16 %v196
    %v257 = vpack.c.b16 %v227, %v225
    %v258 = vpack.c.b16 %v228, %v226
    %v259 = vpack.c.b16 %v231, %v229
    %v260 = vpack.c.b16 %v232, %v230
    %v261 = vpack.c.b16 %v235, %v233
    %v262 = vpack.c.b16 %v236, %v234
    %v263 = vpack.c.b16 %v239, %v237
    %v264 = vpack.c.b16 %v240, %v238
    %v265 = vpack.c.b16 %v243, %v241
    %v266 = vpack.c.b16 %v244, %v242
    %v267 = vpack.c.b16 %v247, %v245
    %v268 = vpack.c.b16 %v248, %v246
    %v269 = vpack.c.b16 %v251, %v249
    %v270 = vpack.c.b16 %v252, %v250
    %v271 = vpack.c.b16 %v255, %v253
    %v272 = vpack.c.b16 %v256, %v254
    %289 = vmatprep.subr.bf16.mxu0 %v258
    %290 = vmatpush1.bf16.msra.mxu0 %v257
    %291 = vmatprep.subr.bf16.mxu0 %v260
    %292 = vmatpush1.bf16.msra.mxu0 %v259
    %293 = vmatprep.subr.bf16.mxu0 %v262
    %294 = vmatpush1.bf16.msra.mxu0 %v261
    %295 = vmatprep.subr.bf16.mxu0 %v264
    %296 = vmatpush1.bf16.msra.mxu0 %v263
    %297 = vmatprep.subr.bf16.mxu0 %v266
    %298 = vmatpush1.bf16.msra.mxu0 %v265
    %299 = vmatprep.subr.bf16.mxu0 %v268
    %300 = vmatpush1.bf16.msra.mxu0 %v267
    %301 = vmatprep.subr.bf16.mxu0 %v270
    %302 = vmatpush1.bf16.msra.mxu0 %v269
    %303 = vmatprep.subr.bf16.mxu0 %v272
    %304 = vmatpush1.bf16.msra.mxu0 %v271
    %305 = vmatprep.subr.bf16.mxu0 0
    %306 = vmatpush1.bf16.msra.mxu0 0
    %307 = vmatprep.subr.bf16.mxu0 0
    %308 = vmatpush1.bf16.msra.mxu0 0
    %309 = vmatprep.subr.bf16.mxu0 0
    %310 = vmatpush1.bf16.msra.mxu0 0
    %311 = vmatprep.subr.bf16.mxu0 0
    %312 = vmatpush1.bf16.msra.mxu0 0
    %313 = vmatprep.subr.bf16.mxu0 0
    %314 = vmatpush1.bf16.msra.mxu0 0
    %315 = vmatprep.subr.bf16.mxu0 0
    %316 = vmatpush1.bf16.msra.mxu0 0
    %317 = vmatprep.subr.bf16.mxu0 0
    %318 = vmatpush1.bf16.msra.mxu0 0
    %319 = vmatprep.subr.bf16.mxu0 0
    %320 = vmatpush1.bf16.msra.mxu0 0
    %321 = vmatprep.mubr.bf16.mxu0 0
    %322 = vmatmul.mubr.bf16.gmra.mrb[0].mxu0 %v180
    %v323 = vpop.f32.mrb[0].mxu0
    %v324 = vadd.f32 %v202, %v323
    %v325 = vpop.f32.mrb[0].mxu0
    %v326 = vadd.f32 %v206, %v325
    %v327 = vpop.f32.mrb[0].mxu0
    %v328 = vpop.f32.mrb[0].mxu0
    %329 = vdwg.mxu0
    %v330 = vsub.f32 0.0, %v324
    %v331 = vsub.f32 0.0, %v326
    %v332 = vmul.f32 %v330, 1.442695
    %v333 = vpow.pop %v332
    %v334 = vmul.f32 %v331, 1.442695
    %v335 = vpow.pop %v334
    %v336 = vadd.f32 %v333, 1.0
    %v337 = vadd.f32 %v335, 1.0
    %v338 = vrcp.pop %v336
    %v339 = vrcp.pop %v337
    %340 = vst [vmem:[#allocation9] sm:$0xff] %v338
    %341 = vst [vmem:[#allocation9 + $0x8] sm:$0xff] %v339
    // Predicated region
    $region38: #{tpu_custom_call.1} parent=1 // pred_check
      _
    $region39: #{tpu_custom_call.1} parent=1 // pred_check_branch
      %343 = sbr.rel (0) target = $region41
    $region40: #{tpu_custom_call.1} parent=1 // pred_region
      %s345 = ssub.s32 256, 256
      %346 = vsyncadd [#allocation5], %s345
      %s348 = sshll.u32 [#allocation9], 4
      %s349 = int_to_ptr.vmem [resolvable:$true] %s348
      %351 = dma.vmem_to_hbm [thread:$0]  %s349, 256, %s5, [#allocation5]
    $region41: #{tpu_custom_call.1} parent=1 // pred_fallthru
      _
    // Predicated region
    $region42: #{tpu_custom_call.1} parent=1 // pred_check
      _
    $region43: #{tpu_custom_call.1} parent=1 // pred_check_branch
      %353 = sbr.rel (0) target = $region45
    $region44: #{tpu_custom_call.1} parent=1 // pred_region
      %354 = dma.done [#allocation5], 256
    $region45: #{tpu_custom_call.1} parent=1 // pred_fallthru
      _
    %355 = vsyncpa [#allocation4], 1
    %356 = vsyncpa [#allocation7], 1
    %357 = vsyncpa [#allocation5], 1

// kernel: tpu_custom_call.1
$region0: #{tpu_custom_call.1}
  #allocation0 [shape = 'u32[]', space=smem, size = 0x4, offset = 0x4, fixed_abs, tag = 'smem constant byte address 0x4 - core index']
  #allocation1 [shape = 'u32[144,128]{1,0:T(1,128)}', space=vmem, size = 0x12000, scoped, tag = 'internal scratch']
  #allocation2 [shape = 'bf16[8,128]{1,0:T(8,128)(2,1)}', space=vmem, size = 0x800, scoped, tag = 'scratch operand']
  %s0 = inlined_call_operand.hbm [shape: bf16[8,128], index: 0, kind: input, shape index: {}]
  %s1 = inlined_call_operand.hbm [shape: bf16[128,128], index: 1, kind: input, shape index: {}]
  %s2 = inlined_call_operand.vmem [shape: f32[1,128], index: 2, kind: input, shape index: {}]
  %s3 = inlined_call_operand.hbm [shape: bf16[128,256], index: 3, kind: input, shape index: {}]
  %s4 = inlined_call_operand.vmem [shape: f32[1,256], index: 4, kind: input, shape index: {}]
  %s5 = inlined_call_operand.hbm [shape: f32[8,256], index: 5, kind: output, shape index: {}]
  %s6 = sld [smem:[#allocation0]]
  $region46: #{tpu_custom_call.1} parent=0
    _
  %s8 = ssub.s32 1, %s6
  %s9 = scalar_select 0, %s8, %s6
  $region1: #{tpu_custom_call.1} parent=0
    #allocation3 [shape = 'u8[2048]{0}', space=vmem, size = 0x800, scoped, tag = 'input window, operand 0, single buffered']
    #allocation4 [shape = 's32[1]{0}', space=sflag, size = 0x4, scoped, tag = 'scoped memory for tpu_custom_call.1']
    #allocation5 [shape = 's32[1]{0}', space=sflag, size = 0x4, scoped, tag = 'scoped memory for tpu_custom_call.1']
    #allocation6 [shape = 'u8[32768]{0}', space=vmem, size = 0x8000, scoped, tag = 'input window, operand 1, single buffered']
    #allocation7 [shape = 's32[1]{0}', space=sflag, size = 0x4, scoped, tag = 'scoped memory for tpu_custom_call.1']
    #allocation8 [shape = 'u8[65536]{0}', space=vmem, size = 0x10000, scoped, tag = 'input window, operand 3, single buffered']
    #allocation9 [shape = 'u8[8192]{0}', space=vmem, size = 0x2000, scoped, tag = 'output window, operand 0, single buffered']
    %10 = vsyncpa [#allocation4], 0
    %11 = vsyncpa [#allocation7], 0
    %12 = vsyncpa [#allocation5], 0
    // Predicated region
    $region2: #{tpu_custom_call.1} parent=1 // pred_check
      _
    $region3: #{tpu_custom_call.1} parent=1 // pred_check_branch
      %14 = sbr.rel (0) target = $region5
    $region4: #{tpu_custom_call.1} parent=1 // pred_region
      %s16 = ssub.s32 64, 64
      %17 = vsyncadd [#allocation4], %s16
      %s19 = sshll.u32 [#allocation3], 4
      %s20 = int_to_ptr.vmem [resolvable:$true] %s19
      %22 = dma.hbm_to_vmem [thread:$0]  %s0, 64, %s20, [#allocation4]
    $region5: #{tpu_custom_call.1} parent=1 // pred_fallthru
      _
    // Predicated region
    $region6: #{tpu_custom_call.1} parent=1 // pred_check
      _
    $region7: #{tpu_custom_call.1} parent=1 // pred_check_branch
      %24 = sbr.rel (0) target = $region9
    $region8: #{tpu_custom_call.1} parent=1 // pred_region
      %s26 = ssub.s32 1024, 1024
      %27 = vsyncadd [#allocation7], %s26
      %s28 = sshll.u32 [#allocation6], 4
      %s29 = int_to_ptr.vmem [resolvable:$true] %s28
      %34 = dma.hbm_to_vmem [thread:$0]  %s1, 1024, %s29, [#allocation7], 64, 64, 4
    $region9: #{tpu_custom_call.1} parent=1 // pred_fallthru
      _
    // Predicated region
    $region10: #{tpu_custom_call.1} parent=1 // pred_check
      _
    $region11: #{tpu_custom_call.1} parent=1 // pred_check_branch
      %36 = sbr.rel (0) target = $region13
    $region12: #{tpu_custom_call.1} parent=1 // pred_region
      _
    $region13: #{tpu_custom_call.1} parent=1 // pred_fallthru
      _
    // Predicated region
    $region14: #{tpu_custom_call.1} parent=1 // pred_check
      _
    $region15: #{tpu_custom_call.1} parent=1 // pred_check_branch
      %38 = sbr.rel (0) target = $region17
    $region16: #{tpu_custom_call.1} parent=1 // pred_region
      %s40 = ssub.s32 2048, 2048
      %41 = vsyncadd [#allocation7], %s40
      %s42 = sshll.u32 [#allocation8], 4
      %s43 = int_to_ptr.vmem [resolvable:$true] %s42
      %48 = dma.hbm_to_vmem [thread:$0]  %s3, 2048, %s43, [#allocation7], 128, 128, 8
    $region17: #{tpu_custom_call.1} parent=1 // pred_fallthru
      _
    // Predicated region
    $region18: #{tpu_custom_call.1} parent=1 // pred_check
      _
    $region19: #{tpu_custom_call.1} parent=1 // pred_check_branch
      %50 = sbr.rel (0) target = $region21
    $region20: #{tpu_custom_call.1} parent=1 // pred_region
      _
    $region21: #{tpu_custom_call.1} parent=1 // pred_fallthru
      _
    // Predicated region
    $region22: #{tpu_custom_call.1} parent=1 // pred_check
      _
    $region23: #{tpu_custom_call.1} parent=1 // pred_check_branch
      %52 = sbr.rel (0) target = $region25
    $region24: #{tpu_custom_call.1} parent=1 // pred_region
      %53 = dma.done [#allocation4], 64
    $region25: #{tpu_custom_call.1} parent=1 // pred_fallthru
      _
    // Predicated region
    $region26: #{tpu_custom_call.1} parent=1 // pred_check
      _
    $region27: #{tpu_custom_call.1} parent=1 // pred_check_branch
      %55 = sbr.rel (0) target = $region29
    $region28: #{tpu_custom_call.1} parent=1 // pred_region
      %56 = dma.done [#allocation7], 1024
    $region29: #{tpu_custom_call.1} parent=1 // pred_fallthru
      _
    // Predicated region
    $region30: #{tpu_custom_call.1} parent=1 // pred_check
      _
    $region31: #{tpu_custom_call.1} parent=1 // pred_check_branch
      %58 = sbr.rel (0) target = $region33
    $region32: #{tpu_custom_call.1} parent=1 // pred_region
      %59 = dma.done [#allocation7], 2048
    $region33: #{tpu_custom_call.1} parent=1 // pred_fallthru
      _
    %p61 = scmp.eq.s32.totalorder 0, 0
    // Predicated region
    $region34: #{tpu_custom_call.1} parent=1 // pred_check
      %p62 = pneg %p61
    $region35: #{tpu_custom_call.1} parent=1 // pred_check_branch
      %64 = sbr.rel (%p62) target = $region37
    $region36: #{tpu_custom_call.1} parent=1 // pred_region
      %v65 = vld [vmem:[#allocation3] sm:$0xf]
      %v66 = vld [vmem:[#allocation6] sm:$0xf]
      %v67 = vld [vmem:[#allocation6 + $0x4] sm:$0xf]
      %v68 = vld [vmem:[#allocation6 + $0x8] sm:$0xf]
      %v69 = vld [vmem:[#allocation6 + $0xc] sm:$0xf]
      %v70 = vld [vmem:[#allocation6 + $0x10] sm:$0xf]
      %v71 = vld [vmem:[#allocation6 + $0x14] sm:$0xf]
      %v72 = vld [vmem:[#allocation6 + $0x18] sm:$0xf]
      %v73 = vld [vmem:[#allocation6 + $0x1c] sm:$0xf]
      %v74 = vld [vmem:[#allocation6 + $0x20] sm:$0xf]
      %v75 = vld [vmem:[#allocation6 + $0x24] sm:$0xf]
      %v76 = vld [vmem:[#allocation6 + $0x28] sm:$0xf]
      %v77 = vld [vmem:[#allocation6 + $0x2c] sm:$0xf]
      %v78 = vld [vmem:[#allocation6 + $0x30] sm:$0xf]
      %v79 = vld [vmem:[#allocation6 + $0x34] sm:$0xf]
      %v80 = vld [vmem:[#allocation6 + $0x38] sm:$0xf]
      %v81 = vld [vmem:[#allocation6 + $0x3c] sm:$0xf]
      %v82 = vld [vmem:[%s2] sm:$0x1]
      %v84 = vlaneseq
      %v85 = vshrl.u32 %v84, 7
      %v86 = vsub.s32 0, %v85
      %v87 = vrot.slane %v82, %v86
      %v105 = vunpack.c.l.b16 %v66
      %v106 = vunpack.c.l.b16 %v67
      %v107 = vunpack.c.l.b16 %v68
      %v108 = vunpack.c.l.b16 %v69
      %v109 = vunpack.c.l.b16 %v70
      %v110 = vunpack.c.l.b16 %v71
      %v111 = vunpack.c.l.b16 %v72
      %v112 = vunpack.c.l.b16 %v73
      %v113 = vunpack.c.l.b16 %v74
      %v114 = vunpack.c.l.b16 %v75
      %v115 = vunpack.c.l.b16 %v76
      %v116 = vunpack.c.l.b16 %v77
      %v117 = vunpack.c.l.b16 %v78
      %v118 = vunpack.c.l.b16 %v79
      %v119 = vunpack.c.l.b16 %v80
      %v120 = vunpack.c.l.b16 %v81
      %v121 = vpack.c.b16 %v106, %v105
      %v122 = vpack.c.b16 %v108, %v107
      %v123 = vpack.c.b16 %v110, %v109
      %v124 = vpack.c.b16 %v112, %v111
      %v125 = vpack.c.b16 %v114, %v113
      %v126 = vpack.c.b16 %v116, %v115
      %v127 = vpack.c.b16 %v118, %v117
      %v128 = vpack.c.b16 %v120, %v119
      %137 = vmatprep.subr.bf16.mxu0 0
      %138 = vmatpush1.bf16.msra.mxu0 %v121
      %139 = vmatprep.subr.bf16.mxu0 0
      %140 = vmatpush1.bf16.msra.mxu0 %v122
      %141 = vmatprep.subr.bf16.mxu0 0
      %142 = vmatpush1.bf16.msra.mxu0 %v123
      %143 = vmatprep.subr.bf16.mxu0 0
      %144 = vmatpush1.bf16.msra.mxu0 %v124
      %145 = vmatprep.subr.bf16.mxu0 0
      %146 = vmatpush1.bf16.msra.mxu0 %v125
      %147 = vmatprep.subr.bf16.mxu0 0
      %148 = vmatpush1.bf16.msra.mxu0 %v126
      %149 = vmatprep.subr.bf16.mxu0 0
      %150 = vmatpush1.bf16.msra.mxu0 %v127
      %151 = vmatprep.subr.bf16.mxu0 0
      %152 = vmatpush1.bf16.msra.mxu0 %v128
      %153 = vmatprep.subr.bf16.mxu0 0
      %154 = vmatpush1.bf16.msra.mxu0 0
      %155 = vmatprep.subr.bf16.mxu0 0
      %156 = vmatpush1.bf16.msra.mxu0 0
      %157 = vmatprep.subr.bf16.mxu0 0
      %158 = vmatpush1.bf16.msra.mxu0 0
      %159 = vmatprep.subr.bf16.mxu0 0
      %160 = vmatpush1.bf16.msra.mxu0 0
      %161 = vmatprep.subr.bf16.mxu0 0
      %162 = vmatpush1.bf16.msra.mxu0 0
      %163 = vmatprep.subr.bf16.mxu0 0
      %164 = vmatpush1.bf16.msra.mxu0 0
      %165 = vmatprep.subr.bf16.mxu0 0
      %166 = vmatpush1.bf16.msra.mxu0 0
      %167 = vmatprep.subr.bf16.mxu0 0
      %168 = vmatpush1.bf16.msra.mxu0 0
      %169 = vmatprep.mubr.bf16.mxu0 0
      %170 = vmatmul.mubr.bf16.gmra.mrb[0].mxu0 %v65
      %v171 = vpop.f32.mrb[0].mxu0
      %v172 = vadd.f32 %v87, %v171
      %v173 = vpop.f32.mrb[0].mxu0
      %v174 = vpop.f32.mrb[0].mxu0
      %v175 = vpop.f32.mrb[0].mxu0
      %176 = vdwg.mxu0
      %v177 = vmax.f32 %v172, 0.0
      %v178 = vpack.c.bf16 %v177, %v177
      %179 = vst [vmem:[#allocation2] sm:$0xf] %v178
    $region37: #{tpu_custom_call.1} parent=1 // pred_fallthru
      _
    %v180 = vld [vmem:[#allocation2] sm:$0xf]
    %v181 = vld [vmem:[#allocation8] sm:$0xff]
    %v182 = vld [vmem:[#allocation8 + $0x8] sm:$0xff]
    %v183 = vld [vmem:[#allocation8 + $0x10] sm:$0xff]
    %v184 = vld [vmem:[#allocation8 + $0x18] sm:$0xff]
    %v185 = vld [vmem:[#allocation8 + $0x20] sm:$0xff]
    %v186 = vld [vmem:[#allocation8 + $0x28] sm:$0xff]
    %v187 = vld [vmem:[#allocation8 + $0x30] sm:$0xff]
    %v188 = vld [vmem:[#allocation8 + $0x38] sm:$0xff]
    %v189 = vld [vmem:[#allocation8 + $0x40] sm:$0xff]
    %v190 = vld [vmem:[#allocation8 + $0x48] sm:$0xff]
    %v191 = vld [vmem:[#allocation8 + $0x50] sm:$0xff]
    %v192 = vld [vmem:[#allocation8 + $0x58] sm:$0xff]
    %v193 = vld [vmem:[#allocation8 + $0x60] sm:$0xff]
    %v194 = vld [vmem:[#allocation8 + $0x68] sm:$0xff]
    %v195 = vld [vmem:[#allocation8 + $0x70] sm:$0xff]
    %v196 = vld [vmem:[#allocation8 + $0x78] sm:$0xff]
    %v197 = vld [vmem:[%s4] sm:$0x3]
    %v199 = vlaneseq
    %v200 = vshrl.u32 %v199, 7
    %v201 = vsub.s32 0, %v200
    %v202 = vrot.slane %v197, %v201
    %v203 = vlaneseq
    %v204 = vshrl.u32 %v203, 7
    %v205 = vsub.s32 1, %v204
    %v206 = vrot.slane %v197, %v205
    %v225 = vunpack.c.l.b16 %v181
    %v226 = vunpack.c.h.b16 %v181
    %v227 = vunpack.c.l.b16 %v182
    %v228 = vunpack.c.h.b16 %v182
    %v229 = vunpack.c.l.b16 %v183
    %v230 = vunpack.c.h.b16 %v183
    %v231 = vunpack.c.l.b16 %v184
    %v232 = vunpack.c.h.b16 %v184
    %v233 = vunpack.c.l.b16 %v185
    %v234 = vunpack.c.h.b16 %v185
    %v235 = vunpack.c.l.b16 %v186
    %v236 = vunpack.c.h.b16 %v186
    %v237 = vunpack.c.l.b16 %v187
    %v238 = vunpack.c.h.b16 %v187
    %v239 = vunpack.c.l.b16 %v188
    %v240 = vunpack.c.h.b16 %v188
    %v241 = vunpack.c.l.b16 %v189
    %v242 = vunpack.c.h.b16 %v189
    %v243 = vunpack.c.l.b16 %v190
    %v244 = vunpack.c.h.b16 %v190
    %v245 = vunpack.c.l.b16 %v191
    %v246 = vunpack.c.h.b16 %v191
    %v247 = vunpack.c.l.b16 %v192
    %v248 = vunpack.c.h.b16 %v192
    %v249 = vunpack.c.l.b16 %v193
    %v250 = vunpack.c.h.b16 %v193
    %v251 = vunpack.c.l.b16 %v194
    %v252 = vunpack.c.h.b16 %v194
    %v253 = vunpack.c.l.b16 %v195
    %v254 = vunpack.c.h.b16 %v195
    %v255 = vunpack.c.l.b16 %v196
    %v256 = vunpack.c.h.b16 %v196
    %v257 = vpack.c.b16 %v227, %v225
    %v258 = vpack.c.b16 %v228, %v226
    %v259 = vpack.c.b16 %v231, %v229
    %v260 = vpack.c.b16 %v232, %v230
    %v261 = vpack.c.b16 %v235, %v233
    %v262 = vpack.c.b16 %v236, %v234
    %v263 = vpack.c.b16 %v239, %v237
    %v264 = vpack.c.b16 %v240, %v238
    %v265 = vpack.c.b16 %v243, %v241
    %v266 = vpack.c.b16 %v244, %v242
    %v267 = vpack.c.b16 %v247, %v245
    %v268 = vpack.c.b16 %v248, %v246
    %v269 = vpack.c.b16 %v251, %v249
    %v270 = vpack.c.b16 %v252, %v250
    %v271 = vpack.c.b16 %v255, %v253
    %v272 = vpack.c.b16 %v256, %v254
    %289 = vmatprep.subr.bf16.mxu0 %v258
    %290 = vmatpush1.bf16.msra.mxu0 %v257
    %291 = vmatprep.subr.bf16.mxu0 %v260
    %292 = vmatpush1.bf16.msra.mxu0 %v259
    %293 = vmatprep.subr.bf16.mxu0 %v262
    %294 = vmatpush1.bf16.msra.mxu0 %v261
    %295 = vmatprep.subr.bf16.mxu0 %v264
    %296 = vmatpush1.bf16.msra.mxu0 %v263
    %297 = vmatprep.subr.bf16.mxu0 %v266
    %298 = vmatpush1.bf16.msra.mxu0 %v265
    %299 = vmatprep.subr.bf16.mxu0 %v268
    %300 = vmatpush1.bf16.msra.mxu0 %v267
    %301 = vmatprep.subr.bf16.mxu0 %v270
    %302 = vmatpush1.bf16.msra.mxu0 %v269
    %303 = vmatprep.subr.bf16.mxu0 %v272
    %304 = vmatpush1.bf16.msra.mxu0 %v271
    %305 = vmatprep.subr.bf16.mxu0 0
    %306 = vmatpush1.bf16.msra.mxu0 0
    %307 = vmatprep.subr.bf16.mxu0 0
    %308 = vmatpush1.bf16.msra.mxu0 0
    %309 = vmatprep.subr.bf16.mxu0 0
    %310 = vmatpush1.bf16.msra.mxu0 0
    %311 = vmatprep.subr.bf16.mxu0 0
    %312 = vmatpush1.bf16.msra.mxu0 0
    %313 = vmatprep.subr.bf16.mxu0 0
    %314 = vmatpush1.bf16.msra.mxu0 0
    %315 = vmatprep.subr.bf16.mxu0 0
    %316 = vmatpush1.bf16.msra.mxu0 0
    %317 = vmatprep.subr.bf16.mxu0 0
    %318 = vmatpush1.bf16.msra.mxu0 0
    %319 = vmatprep.subr.bf16.mxu0 0
    %320 = vmatpush1.bf16.msra.mxu0 0
    %321 = vmatprep.mubr.bf16.mxu0 0
    %322 = vmatmul.mubr.bf16.gmra.mrb[0].mxu0 %v180
    %v323 = vpop.f32.mrb[0].mxu0
    %v324 = vadd.f32 %v202, %v323
    %v325 = vpop.f32.mrb[0].mxu0
    %v326 = vadd.f32 %v206, %v325
    %v327 = vpop.f32.mrb[0].mxu0
    %v328 = vpop.f32.mrb[0].mxu0
    %329 = vdwg.mxu0
    %v330 = vsub.f32 0.0, %v324
    %v331 = vsub.f32 0.0, %v326
    %v332 = vmul.f32 %v330, 1.442695
    %v333 = vpow.pop %v332
    %v334 = vmul.f32 %v331, 1.442695
    %v335 = vpow.pop %v334
    %v336 = vadd.f32 %v333, 1.0
    %v337 = vadd.f32 %v335, 1.0
    %v338 = vrcp.pop %v336
    %v339 = vrcp.pop %v337
    %340 = vst [vmem:[#allocation9] sm:$0xff] %v338
    %341 = vst [vmem:[#allocation9 + $0x8] sm:$0xff] %v339
    // Predicated region
    $region38: #{tpu_custom_call.1} parent=1 // pred_check
      _
    $region39: #{tpu_custom_call.1} parent=1 // pred_check_branch
      %343 = sbr.rel (0) target = $region41
    $region40: #{tpu_custom_call.1} parent=1 // pred_region
      %s345 = ssub.s32 256, 256
      %346 = vsyncadd [#allocation5], %s345
      %s348 = sshll.u32 [#allocation9], 4
      %s349 = int_to_ptr.vmem [resolvable:$true] %s348
      %351 = dma.vmem_to_hbm [thread:$0]  %s349, 256, %s5, [#allocation5]
    $region41: #{tpu_custom_call.1} parent=1 // pred_fallthru
      _
    // Predicated region
    $region42: #{tpu_custom_call.1} parent=1 // pred_check
      _
    $region43: #{tpu_custom_call.1} parent=1 // pred_check_branch
      %353 = sbr.rel (0) target = $region45
    $region44: #{tpu_custom_call.1} parent=1 // pred_region
      %354 = dma.done [#allocation5], 256
    $region45: #{tpu_custom_call.1} parent=1 // pred_fallthru
      _
    %355 = vsyncpa [#allocation4], 1
    %356 = vsyncpa [#allocation7], 1
    %357 = vsyncpa [#allocation5], 1

</llo_original>
